<compile_context>
chip_gen: v5e
topology: v5e:2x2
jax: 0.10.0
libtpu: 0.0.40
codegen_flags: <defaults>
</compile_context>

<pallas_src>
from functools import lru_cache

import numpy as np
import jax
import jax.numpy as jnp
from jax.experimental import pallas as pl
from jax.experimental.pallas import tpu as pltpu


def _avg_pool_kernel(x_ref, b_ref, o_ref):
    # x_ref: (TB, H, W) input planes
    # b_ref: (W, Wo)    0/1 column-pooling matrix
    # o_ref: (TB, Ho, Wo)
    TB, H, W = x_ref.shape
    _, Ho, Wo = o_ref.shape
    K = H // Ho

    # (TB, H, W) -> (TB*H, W): layout-preserving when H % 8 == 0 (H maps to sublanes).
    x2 = x_ref[...].reshape(TB * H, W)
    # Column pooling: one big-M matmul on the MXU, f32 accumulation.
    colsum = jnp.dot(x2, b_ref[...], preferred_element_type=jnp.float32)  # (TB*H, Wo)
    # Row pooling: split H -> (Ho, K) along sublanes (free when K % 8 == 0) + VPU sum.
    pooled = jnp.sum(colsum.reshape(TB, Ho, K, Wo), axis=2)               # (TB, Ho, Wo)
    # Single f32 scale -> exact K x K mean, then cast to the output dtype.
    o_ref[...] = (pooled * (1.0 / (K * K))).astype(o_ref.dtype)


@lru_cache(maxsize=None)
def _pool_matrix(W, K, dtype_name):
    """(W, W//K) 0/1 matrix: x @ B sums each group of K adjacent columns."""
    Wo = W // K
    cols = np.arange(W) // K
    mat = cols[:, None] == np.arange(Wo)[None, :]
    return jnp.asarray(mat, dtype=dtype_name)


def _choose_tb(NC, plane_bytes, max_block_bytes=8 * 1024 * 1024):
    """Planes per grid step: biggest block under the byte cap, balanced across steps,
    and >= 2 steps when NC > 1 so the parallel grid axis can use both v7x cores."""
    tb_max = max(1, max_block_bytes // max(1, plane_bytes))
    steps = -(-NC // tb_max)               # ceil(NC / tb_max)
    if steps < 2 and NC > 1:
        steps = 2
    tb = -(-NC // steps)                   # ceil(NC / steps) -> balanced blocks
    return tb, -(-NC // tb)                # (TB, grid_steps)


def avg_pool2d_pallas(x, pooling_size=32):
    N, C, H, W = x.shape
    K = int(pooling_size)
    assert jnp.issubdtype(x.dtype, jnp.floating), "avg pool kernel expects floating input"
    Ho, Wo = H // K, W // K
    assert Ho >= 1 and Wo >= 1, "spatial dims must be at least pooling_size"
    Hc, Wc = Ho * K, Wo * K
    if (Hc, Wc) != (H, W):
        # PyTorch AvgPool2d (stride == kernel, no padding) ignores the remainder.
        x = x[:, :, :Hc, :Wc]

    NC = N * C
    xf = x.reshape(NC, Hc, Wc)

    B = _pool_matrix(Wc, K, str(x.dtype))            # (Wc, Wo) 0/1, cached across calls
    itemsize = x.dtype.itemsize
    TB, steps = _choose_tb(NC, Hc * Wc * itemsize)
    grid = (steps,)

    cost = pl.CostEstimate(
        flops=int(2 * NC * Hc * Wc * Wo),
        transcendentals=0,
        bytes_accessed=int(NC * Hc * Wc * itemsize
                           + Wc * Wo * itemsize
                           + NC * Ho * Wo * itemsize),
    )

    out = pl.pallas_call(
        _avg_pool_kernel,
        out_shape=jax.ShapeDtypeStruct((NC, Ho, Wo), x.dtype),
        grid_spec=pltpu.PrefetchScalarGridSpec(
            num_scalar_prefetch=0,
            grid=grid,
            in_specs=[
                pl.BlockSpec((TB, Hc, Wc), lambda i: (i, 0, 0)),
                pl.BlockSpec((Wc, Wo), lambda i: (0, 0)),
            ],
            out_specs=pl.BlockSpec((TB, Ho, Wo), lambda i: (i, 0, 0)),
        ),
        compiler_params=pltpu.CompilerParams(
            dimension_semantics=("parallel",),
            vmem_limit_bytes=40 * 1024 * 1024,
        ),
        cost_estimate=cost,
    )(xf, B)
    return out.reshape(N, C, Ho, Wo)


class CModelPallas:
    """Pallas equivalent of c_model: forward(x) = AvgPool2d(pooling_size)(x)."""

    def __init__(self, pooling_size=32):
        self.pooling_size = pooling_size  # no learnable parameters in this module

    def __call__(self, x):
        return avg_pool2d_pallas(x, self.pooling_size)


if __name__ == "__main__":
    # Small shapes consistent with the module: N=2, C=4, spatial 64, pool=32 -> 2x2 out.
    key = jax.random.PRNGKey(0)
    N, C, H, W = 2, 4, 64, 64
    K = 32
    x = jax.random.normal(key, (N, C, H, W), dtype=jnp.float32)

    model = CModelPallas(pooling_size=K)
    y = model(x)
    y = jax.block_until_ready(y)

    # Reference: exact blockwise mean.
    y_ref = x.reshape(N, C, H // K, K, W // K, K).mean(axis=(3, 5))
    assert y.shape == (N, C, H // K, W // K)
    assert jnp.allclose(y, y_ref, atol=1e-5, rtol=1e-5), "mismatch vs reference avg pool"

    print("KERNEL_OK")
</pallas_src>

<mosaic_0001>
module attributes {stable_mosaic.version = 11 : i64} {
  func.func @_avg_pool_kernel(%arg0: i32, %arg1: memref<4x64x64xf32, #tpu.memory_space<vmem>>, %arg2: memref<64x2xf32, #tpu.memory_space<vmem>>, %arg3: memref<4x2x2xf32, #tpu.memory_space<vmem>>) attributes {dimension_semantics = [#tpu.dimension_semantics<parallel>], iteration_bounds = array<i64: 2>, scalar_prefetch = 0 : i64, scratch_operands = 0 : i64, tpu.core_type = #tpu.core_type<tc>, window_params = [{transform_indices = @transform_0, window_bounds = array<i64: 4, 64, 64>}, {pipeline_mode = #tpu.pipeline_mode<synchronous>, transform_indices = @transform_1, window_bounds = array<i64: 64, 2>}, {transform_indices = @transform_2, window_bounds = array<i64: 4, 2, 2>}]} {
    %c0 = arith.constant 0 : index
    %c0_0 = arith.constant 0 : index
    %c0_1 = arith.constant 0 : index
    %0 = vector.load %arg1[%c0, %c0_0, %c0_1] : memref<4x64x64xf32, #tpu.memory_space<vmem>>, vector<4x64x64xf32>
    %1 = vector.shape_cast %0 : vector<4x64x64xf32> to vector<256x64xf32>
    %c0_2 = arith.constant 0 : index
    %c0_3 = arith.constant 0 : index
    %2 = vector.load %arg2[%c0_2, %c0_3] : memref<64x2xf32, #tpu.memory_space<vmem>>, vector<64x2xf32>
    %cst = arith.constant dense<0.000000e+00> : vector<256x2xf32>
    %3 = tpu.matmul %1, %2, %cst {dimension_numbers = #tpu.dot_dimension_numbers<[1], [0], [0], [1], [0, 0, 1, 1], [], []>} : vector<256x64xf32>, vector<64x2xf32>, vector<256x2xf32> -> vector<256x2xf32>
    %4 = vector.shape_cast %3 : vector<256x2xf32> to vector<4x2x32x2xf32>
    %cst_4 = arith.constant dense<0.000000e+00> : vector<4x2x2xf32>
    %5 = vector.multi_reduction <add>, %4, %cst_4 [2] : vector<4x2x32x2xf32> to vector<4x2x2xf32>
    %cst_5 = arith.constant 9.765625E-4 : f32
    %6 = vector.broadcast %cst_5 : f32 to vector<4x2x2xf32>
    %7 = arith.mulf %5, %6 : vector<4x2x2xf32>
    %c0_6 = arith.constant 0 : index
    %c0_7 = arith.constant 0 : index
    %c0_8 = arith.constant 0 : index
    %8 = vector.load %arg3[%c0_6, %c0_7, %c0_8] : memref<4x2x2xf32, #tpu.memory_space<vmem>>, vector<4x2x2xf32>
    tpu.vector_store %arg3[%c0_6, %c0_7, %c0_8], %7 {strides = array<i32>} : memref<4x2x2xf32, #tpu.memory_space<vmem>>, vector<4x2x2xf32>,
    return
  }
  func.func @transform_0(%arg0: i32) -> (i32, i32, i32) {
    %c0_i32 = arith.constant 0 : i32
    %c0_i32_0 = arith.constant 0 : i32
    %c0_i32_1 = arith.constant 0 : i32
    return %arg0, %c0_i32, %c0_i32_0 : i32, i32, i32
  }
  func.func @transform_1(%arg0: i32) -> (i32, i32) {
    %c0_i32 = arith.constant 0 : i32
    %c0_i32_0 = arith.constant 0 : i32
    %c0_i32_1 = arith.constant 0 : i32
    return %c0_i32, %c0_i32_0 : i32, i32
  }
  func.func @transform_2(%arg0: i32) -> (i32, i32, i32) {
    %c0_i32 = arith.constant 0 : i32
    %c0_i32_0 = arith.constant 0 : i32
    %c0_i32_1 = arith.constant 0 : i32
    return %arg0, %c0_i32, %c0_i32_0 : i32, i32, i32
  }
}

</mosaic_0001>

<llo_original>
// kernel: tpu_custom_call.1
$region0: #{tpu_custom_call.1}
  #allocation0 [shape = 'u32[]', space=smem, size = 0x4, offset = 0x4, fixed_abs, tag = 'smem constant byte address 0x4 - core index']
  #allocation1 [shape = 'u32[72,128]{1,0:T(1,128)}', space=vmem, size = 0x9000, scoped, tag = 'internal scratch']
  %s0 = inlined_call_operand.hbm [shape: f32[8,64,64], index: 0, kind: input, shape index: {}]
  %s1 = inlined_call_operand.vmem [shape: f32[64,2], index: 1, kind: input, shape index: {}]
  %s2 = inlined_call_operand.vmem [shape: f32[8,2,2], index: 2, kind: output, shape index: {}]
  %s3 = sld [smem:[#allocation0]]
  $region45: #{tpu_custom_call.1} parent=0
    _
  %s5 = ssub.s32 1, %s3
  %s6 = scalar_select 0, %s5, %s3
  $region1: #{tpu_custom_call.1} parent=0
    #allocation2 [shape = 'u8[262144]{0}', space=vmem, size = 0x40000, scoped, tag = 'input window, operand 0']
    #allocation3 [shape = 's32[2]{0}', space=sflag, size = 0x8, scoped, tag = 'scoped memory for tpu_custom_call.1']
    %7 = vsyncpa [#allocation3], 0
    %s8 = scalar_lea.sflag [#allocation3], 1
    %9 = vsyncpa %s8, 0
    loop: start=0, step=1, limit=4
    $region2: #{tpu_custom_call.1} parent=1 // loop_pre_header
      _
    $region3: #{tpu_custom_call.1} parent=1 // loop_header
      %s11 = sphi 0, %s15
      %p12 = scmp.ge.s32.totalorder %s11, 4
      %s21 = sphi 0, %s23
      %s24 = sphi 0, %s21
      %s25 = sphi 0, %s24
      %s41 = sphi 0, %s25
      %s45 = sphi 0, %s45
      %s47 = sphi 0, %s45
      %s48 = sphi 0, %s47
      %s62 = sphi 0, %s48
      %s68 = sphi 0, %s70
      %s71 = sphi 0, %s68
      %s72 = sphi 0, %s71
      %s88 = sphi 0, %s72
    $region4: #{tpu_custom_call.1} parent=1 // loop_header_branch
      %14 = sbr.rel (%p12) target = $region8
    $region5: #{tpu_custom_call.1} parent=1 // loop_body
      %s16 = ssub.s32 %s11, 1
      %s17 = ssub.s32 %s11, 2
      %s18 = sadd.s32 %s11, 1
      %s19 = ssub.s32 %s11, %s18
      %p20 = scmp.eq.s32.totalorder %s19, 0
      %s22 = sadd.s32 %s21, 1
      %s23 = scalar_select %p20, %s21, %s22
      %p26 = pneg %p20
      %p27 = scmp.eq.s32.totalorder %s11, 1
      %p28 = por %p26, %p27
      %p29 = scmp.ne.s32.totalorder %s21, %s24
      %p30 = scmp.eq.s32.totalorder %s11, 0
      %p31 = por %p29, %p30
      %p32 = scmp.ne.s32.totalorder %s21, %s24
      %p33 = scmp.eq.s32.totalorder %s16, 1
      %p34 = por %p32, %p33
      %p35 = scmp.ne.s32.totalorder %s24, %s25
      %p36 = scmp.eq.s32.totalorder %s16, 0
      %p37 = por %p35, %p36
      %p38 = scmp.ne.s32.totalorder %s24, %s25
      %p39 = scmp.eq.s32.totalorder %s17, 1
      %p40 = por %p38, %p39
      %p42 = scmp.ne.s32.totalorder %s25, %s41
      %p43 = scmp.eq.s32.totalorder %s17, 0
      %p44 = por %p42, %p43
      %s46 = sadd.s32 %s45, 1
      %p49 = scmp.eq.s32.totalorder %s11, 1
      %p50 = scmp.ne.s32.totalorder %s45, %s47
      %p51 = scmp.eq.s32.totalorder %s11, 0
      %p52 = por %p50, %p51
      %p53 = scmp.ne.s32.totalorder %s45, %s47
      %p54 = scmp.eq.s32.totalorder %s16, 1
      %p55 = por %p53, %p54
      %p56 = scmp.ne.s32.totalorder %s47, %s48
      %p57 = scmp.eq.s32.totalorder %s16, 0
      %p58 = por %p56, %p57
      %p59 = scmp.ne.s32.totalorder %s47, %s48
      %p60 = scmp.eq.s32.totalorder %s17, 1
      %p61 = por %p59, %p60
      %p63 = scmp.ne.s32.totalorder %s48, %s62
      %p64 = scmp.eq.s32.totalorder %s17, 0
      %p65 = por %p63, %p64
      %s66 = ssub.s32 %s11, %s18
      %p67 = scmp.eq.s32.totalorder %s66, 0
      %s69 = sadd.s32 %s68, 1
      %s70 = scalar_select %p67, %s68, %s69
      %p73 = pneg %p67
      %p74 = scmp.eq.s32.totalorder %s11, 1
      %p75 = por %p73, %p74
      %p76 = scmp.ne.s32.totalorder %s68, %s71
      %p77 = scmp.eq.s32.totalorder %s11, 0
      %p78 = por %p76, %p77
      %p79 = scmp.ne.s32.totalorder %s68, %s71
      %p80 = scmp.eq.s32.totalorder %s16, 1
      %p81 = por %p79, %p80
      %p82 = scmp.ne.s32.totalorder %s71, %s72
      %p83 = scmp.eq.s32.totalorder %s16, 0
      %p84 = por %p82, %p83
      %p85 = scmp.ne.s32.totalorder %s71, %s72
      %p86 = scmp.eq.s32.totalorder %s17, 1
      %p87 = por %p85, %p86
      %p89 = scmp.ne.s32.totalorder %s72, %s88
      %p90 = scmp.eq.s32.totalorder %s17, 0
      %p91 = por %p89, %p90
      %p92 = scmp.le.s32.totalorder 1, %s11
      %p93 = scmp.lt.s32.totalorder %s11, 3
      %p94 = pnand %p92, %p93
      %p95 = pneg %p94
      // Predicated region
      $region9: #{tpu_custom_call.1} parent=5 // pred_check
        _
      $region10: #{tpu_custom_call.1} parent=5 // pred_check_branch
        %97 = sbr.rel (%p94) target = $region12
      $region11: #{tpu_custom_call.1} parent=5 // pred_region
        %s98 = ssub.s32 %s11, 1
        // Predicated region
        $region13: #{tpu_custom_call.1} parent=11 // pred_check
          %p99 = pneg %p58
        $region14: #{tpu_custom_call.1} parent=11 // pred_check_branch
          %101 = sbr.rel (%p99) target = $region16
        $region15: #{tpu_custom_call.1} parent=11 // pred_region
          _
        $region16: #{tpu_custom_call.1} parent=11 // pred_fallthru
          _
      $region12: #{tpu_custom_call.1} parent=5 // pred_fallthru
        _
      %p102 = scmp.lt.s32.totalorder %s11, 2
      // Predicated region
      $region17: #{tpu_custom_call.1} parent=5 // pred_check
        %p103 = pneg %p102
      $region18: #{tpu_custom_call.1} parent=5 // pred_check_branch
        %105 = sbr.rel (%p103) target = $region20
      $region19: #{tpu_custom_call.1} parent=5 // pred_region
        // Predicated region
        $region21: #{tpu_custom_call.1} parent=19 // pred_check
          %p106 = pneg %p31
        $region22: #{tpu_custom_call.1} parent=19 // pred_check_branch
          %108 = sbr.rel (%p106) target = $region24
        $region23: #{tpu_custom_call.1} parent=19 // pred_region
          %s109 = sand.u32 %s21, 1
          %s110 = scalar_lea.sflag [#allocation3], %s109
          %s111 = sand.u32 %s21, 1
          %s112 = smul.addr %s111, 256
          %s113 = scalar_lea.vmem [#allocation2], %s112
          %s114 = smul.u32 4, %s11
          %116 = vsyncadd %s110, 0
          %s117 = smul.addr %s114, 8
          %s118 = smul.addr %s117, 8
          %s119 = scalar_lea.hbm %s0, %s118
          %s120 = sshll.u32 %s119, 4
          %s121 = int_to_ptr.hbm [resolvable:$true] %s120
          %s122 = sshll.u32 %s113, 4
          %s123 = int_to_ptr.vmem [resolvable:$true] %s122
          %128 = dma.hbm_to_vmem [thread:$0]  %s121, 4096, %s123, %s110, 128, 128, 8
        $region24: #{tpu_custom_call.1} parent=19 // pred_fallthru
          _
      $region20: #{tpu_custom_call.1} parent=5 // pred_fallthru
        _
      %p129 = scmp.le.s32.totalorder 1, %s11
      %p130 = scmp.lt.s32.totalorder %s11, 3
      %p131 = pnand %p129, %p130
      %p132 = pneg %p131
      // Predicated region
      $region25: #{tpu_custom_call.1} parent=5 // pred_check
        _
      $region26: #{tpu_custom_call.1} parent=5 // pred_check_branch
        %134 = sbr.rel (%p131) target = $region28
      $region27: #{tpu_custom_call.1} parent=5 // pred_region
        %s135 = ssub.s32 %s11, 1
        %s136 = sand.u32 %s24, 1
        %s137 = scalar_lea.sflag [#allocation3], %s136
        %s138 = sand.u32 %s24, 1
        %s139 = smul.addr %s138, 256
        %s140 = scalar_lea.vmem [#allocation2], %s139
        // Predicated region
        $region29: #{tpu_custom_call.1} parent=27 // pred_check
          %p141 = pneg %p37
        $region30: #{tpu_custom_call.1} parent=27 // pred_check_branch
          %143 = sbr.rel (%p141) target = $region32
        $region31: #{tpu_custom_call.1} parent=27 // pred_region
          %145 = dma.done %s137, 4096
        $region32: #{tpu_custom_call.1} parent=27 // pred_fallthru
          _
        %s146 = sand.u32 %s24, 1
        %s147 = scalar_lea.sflag [#allocation3], %s146
        %s148 = sand.u32 %s24, 1
        %s149 = smul.addr %s148, 256
        %s150 = scalar_lea.vmem [#allocation2], %s149
        %p151 = pneg %p37
        %p152 = pneg %p34
        %p153 = pneg %p58
        %p154 = pneg %p55
        %p155 = pneg %p84
        %p156 = pneg %p81
        %s157 = smul.u32 4, %s16
        %p158 = scmp.lt.s32.totalorder %s157, 7
        %s159 = scalar_select %p158, %s157, 7
        %s160 = smul.addr %s159, 2
        %s161 = scalar_lea.vmem %s2, %s160
        %s162 = smul.u32 4, %s16
        %s163 = smul.u32 4, %s16
        %p164 = scmp.lt.s32.totalorder %s163, 7
        %s165 = scalar_select %p164, %s163, 7
        %s166 = smul.addr %s165, 2
        %s167 = scalar_lea.vmem %s2, %s166
        %s168 = smul.u32 4, %s16
        %v169 = vld [vmem:[%s140] sm:$0xff]
        %v170 = vld [vmem:[%s140 + $0x8] sm:$0xff]
        %v171 = vld [vmem:[%s140 + $0x10] sm:$0xff]
        %v172 = vld [vmem:[%s140 + $0x18] sm:$0xff]
        %v173 = vld [vmem:[%s140 + $0x20] sm:$0xff]
        %v174 = vld [vmem:[%s140 + $0x28] sm:$0xff]
        %v175 = vld [vmem:[%s140 + $0x30] sm:$0xff]
        %v176 = vld [vmem:[%s140 + $0x38] sm:$0xff]
        %v177 = vld [vmem:[%s140 + $0x40] sm:$0xff]
        %v178 = vld [vmem:[%s140 + $0x48] sm:$0xff]
        %v179 = vld [vmem:[%s140 + $0x50] sm:$0xff]
        %v180 = vld [vmem:[%s140 + $0x58] sm:$0xff]
        %v181 = vld [vmem:[%s140 + $0x60] sm:$0xff]
        %v182 = vld [vmem:[%s140 + $0x68] sm:$0xff]
        %v183 = vld [vmem:[%s140 + $0x70] sm:$0xff]
        %v184 = vld [vmem:[%s140 + $0x78] sm:$0xff]
        %v185 = vld [vmem:[%s140 + $0x80] sm:$0xff]
        %v186 = vld [vmem:[%s140 + $0x88] sm:$0xff]
        %v187 = vld [vmem:[%s140 + $0x90] sm:$0xff]
        %v188 = vld [vmem:[%s140 + $0x98] sm:$0xff]
        %v189 = vld [vmem:[%s140 + $0xa0] sm:$0xff]
        %v190 = vld [vmem:[%s140 + $0xa8] sm:$0xff]
        %v191 = vld [vmem:[%s140 + $0xb0] sm:$0xff]
        %v192 = vld [vmem:[%s140 + $0xb8] sm:$0xff]
        %v193 = vld [vmem:[%s140 + $0xc0] sm:$0xff]
        %v194 = vld [vmem:[%s140 + $0xc8] sm:$0xff]
        %v195 = vld [vmem:[%s140 + $0xd0] sm:$0xff]
        %v196 = vld [vmem:[%s140 + $0xd8] sm:$0xff]
        %v197 = vld [vmem:[%s140 + $0xe0] sm:$0xff]
        %v198 = vld [vmem:[%s140 + $0xe8] sm:$0xff]
        %v199 = vld [vmem:[%s140 + $0xf0] sm:$0xff]
        %v200 = vld [vmem:[%s140 + $0xf8] sm:$0xff]
        %v201 = vld [vmem:[%s1] sm:$0xff]
        %v202 = vld [vmem:[%s1 + $0x8] sm:$0xff]
        %v203 = vld [vmem:[%s1 + $0x10] sm:$0xff]
        %v204 = vld [vmem:[%s1 + $0x18] sm:$0xff]
        %v205 = vld [vmem:[%s1 + $0x20] sm:$0xff]
        %v206 = vld [vmem:[%s1 + $0x28] sm:$0xff]
        %v207 = vld [vmem:[%s1 + $0x30] sm:$0xff]
        %v208 = vld [vmem:[%s1 + $0x38] sm:$0xff]
        %vm209 = vcmask 523264
        %v211 = vsel %vm209, %v169, 0
        %v214 = vsel %vm209, %v170, 0
        %v217 = vsel %vm209, %v171, 0
        %v220 = vsel %vm209, %v172, 0
        %v223 = vsel %vm209, %v173, 0
        %v226 = vsel %vm209, %v174, 0
        %v229 = vsel %vm209, %v175, 0
        %v232 = vsel %vm209, %v176, 0
        %v235 = vsel %vm209, %v177, 0
        %v238 = vsel %vm209, %v178, 0
        %v241 = vsel %vm209, %v179, 0
        %v244 = vsel %vm209, %v180, 0
        %v247 = vsel %vm209, %v181, 0
        %v250 = vsel %vm209, %v182, 0
        %v253 = vsel %vm209, %v183, 0
        %v256 = vsel %vm209, %v184, 0
        %v259 = vsel %vm209, %v185, 0
        %v262 = vsel %vm209, %v186, 0
        %v265 = vsel %vm209, %v187, 0
        %v268 = vsel %vm209, %v188, 0
        %v271 = vsel %vm209, %v189, 0
        %v274 = vsel %vm209, %v190, 0
        %v277 = vsel %vm209, %v191, 0
        %v280 = vsel %vm209, %v192, 0
        %v283 = vsel %vm209, %v193, 0
        %v286 = vsel %vm209, %v194, 0
        %v289 = vsel %vm209, %v195, 0
        %v292 = vsel %vm209, %v196, 0
        %v295 = vsel %vm209, %v197, 0
        %v298 = vsel %vm209, %v198, 0
        %v301 = vsel %vm209, %v199, 0
        %v304 = vsel %vm209, %v200, 0
        %306 = vmatpush.msra.mxu0 0.0
        %307 = vmatpush.msra.mxu0 0.0
        %308 = vmatpush.msra.mxu0 0.0
        %309 = vmatpush.msra.mxu0 0.0
        %310 = vmatpush.msra.mxu0 0.0
        %311 = vmatpush.msra.mxu0 0.0
        %312 = vmatpush.msra.mxu0 0.0
        %313 = vmatpush.msra.mxu0 0.0
        %314 = vmatpush.msra.mxu0 %v208
        %315 = vmatpush.msra.mxu0 %v207
        %316 = vmatpush.msra.mxu0 %v206
        %317 = vmatpush.msra.mxu0 %v205
        %318 = vmatpush.msra.mxu0 %v204
        %319 = vmatpush.msra.mxu0 %v203
        %320 = vmatpush.msra.mxu0 %v202
        %321 = vmatpush.msra.mxu0 %v201
        %322 = vmatmul.f32.gmra.mxu0 %v211
        %v323 = vpop.f32.mrf.mxu0
        %v324 = vadd.f32 0.0, %v323
        %325 = vmatmul.f32.gmra.mxu0 %v214
        %v326 = vpop.f32.mrf.mxu0
        %v327 = vadd.f32 0.0, %v326
        %328 = vmatmul.f32.gmra.mxu0 %v217
        %v329 = vpop.f32.mrf.mxu0
        %v330 = vadd.f32 0.0, %v329
        %331 = vmatmul.f32.gmra.mxu0 %v220
        %v332 = vpop.f32.mrf.mxu0
        %v333 = vadd.f32 0.0, %v332
        %334 = vmatmul.f32.gmra.mxu0 %v223
        %v335 = vpop.f32.mrf.mxu0
        %v336 = vadd.f32 0.0, %v335
        %337 = vmatmul.f32.gmra.mxu0 %v226
        %v338 = vpop.f32.mrf.mxu0
        %v339 = vadd.f32 0.0, %v338
        %340 = vmatmul.f32.gmra.mxu0 %v229
        %v341 = vpop.f32.mrf.mxu0
        %v342 = vadd.f32 0.0, %v341
        %343 = vmatmul.f32.gmra.mxu0 %v232
        %v344 = vpop.f32.mrf.mxu0
        %v345 = vadd.f32 0.0, %v344
        %346 = vmatmul.f32.gmra.mxu0 %v235
        %v347 = vpop.f32.mrf.mxu0
        %v348 = vadd.f32 0.0, %v347
        %349 = vmatmul.f32.gmra.mxu0 %v238
        %v350 = vpop.f32.mrf.mxu0
        %v351 = vadd.f32 0.0, %v350
        %352 = vmatmul.f32.gmra.mxu0 %v241
        %v353 = vpop.f32.mrf.mxu0
        %v354 = vadd.f32 0.0, %v353
        %355 = vmatmul.f32.gmra.mxu0 %v244
        %v356 = vpop.f32.mrf.mxu0
        %v357 = vadd.f32 0.0, %v356
        %358 = vmatmul.f32.gmra.mxu0 %v247
        %v359 = vpop.f32.mrf.mxu0
        %v360 = vadd.f32 0.0, %v359
        %361 = vmatmul.f32.gmra.mxu0 %v250
        %v362 = vpop.f32.mrf.mxu0
        %v363 = vadd.f32 0.0, %v362
        %364 = vmatmul.f32.gmra.mxu0 %v253
        %v365 = vpop.f32.mrf.mxu0
        %v366 = vadd.f32 0.0, %v365
        %367 = vmatmul.f32.gmra.mxu0 %v256
        %v368 = vpop.f32.mrf.mxu0
        %v369 = vadd.f32 0.0, %v368
        %370 = vmatmul.f32.gmra.mxu0 %v259
        %v371 = vpop.f32.mrf.mxu0
        %v372 = vadd.f32 0.0, %v371
        %373 = vmatmul.f32.gmra.mxu0 %v262
        %v374 = vpop.f32.mrf.mxu0
        %v375 = vadd.f32 0.0, %v374
        %376 = vmatmul.f32.gmra.mxu0 %v265
        %v377 = vpop.f32.mrf.mxu0
        %v378 = vadd.f32 0.0, %v377
        %379 = vmatmul.f32.gmra.mxu0 %v268
        %v380 = vpop.f32.mrf.mxu0
        %v381 = vadd.f32 0.0, %v380
        %382 = vmatmul.f32.gmra.mxu0 %v271
        %v383 = vpop.f32.mrf.mxu0
        %v384 = vadd.f32 0.0, %v383
        %385 = vmatmul.f32.gmra.mxu0 %v274
        %v386 = vpop.f32.mrf.mxu0
        %v387 = vadd.f32 0.0, %v386
        %388 = vmatmul.f32.gmra.mxu0 %v277
        %v389 = vpop.f32.mrf.mxu0
        %v390 = vadd.f32 0.0, %v389
        %391 = vmatmul.f32.gmra.mxu0 %v280
        %v392 = vpop.f32.mrf.mxu0
        %v393 = vadd.f32 0.0, %v392
        %394 = vmatmul.f32.gmra.mxu0 %v283
        %v395 = vpop.f32.mrf.mxu0
        %v396 = vadd.f32 0.0, %v395
        %397 = vmatmul.f32.gmra.mxu0 %v286
        %v398 = vpop.f32.mrf.mxu0
        %v399 = vadd.f32 0.0, %v398
        %400 = vmatmul.f32.gmra.mxu0 %v289
        %v401 = vpop.f32.mrf.mxu0
        %v402 = vadd.f32 0.0, %v401
        %403 = vmatmul.f32.gmra.mxu0 %v292
        %v404 = vpop.f32.mrf.mxu0
        %v405 = vadd.f32 0.0, %v404
        %406 = vmatmul.f32.gmra.mxu0 %v295
        %v407 = vpop.f32.mrf.mxu0
        %v408 = vadd.f32 0.0, %v407
        %409 = vmatmul.f32.gmra.mxu0 %v298
        %v410 = vpop.f32.mrf.mxu0
        %v411 = vadd.f32 0.0, %v410
        %412 = vmatmul.f32.gmra.mxu0 %v301
        %v413 = vpop.f32.mrf.mxu0
        %v414 = vadd.f32 0.0, %v413
        %415 = vmatmul.f32.gmra.mxu0 %v304
        %v416 = vpop.f32.mrf.mxu0
        %v417 = vadd.f32 0.0, %v416
        %418 = vdwg.mxu0
        %vm419 = vcmask 15360
        %v420 = vsel %vm419, %v324, 0.0
        %v421 = vsel %vm419, %v327, 0.0
        %v422 = vadd.f32 %v420, %v421
        %v423 = vsel %vm419, %v330, 0.0
        %v424 = vadd.f32 %v422, %v423
        %v425 = vsel %vm419, %v333, 0.0
        %v426 = vadd.f32 %v424, %v425
        %v427 = vrot.slane %v426, 4
        %v428 = vadd.f32 %v426, %v427
        %v429 = vrot.slane %v428, 2
        %v430 = vadd.f32 %v428, %v429
        %v431 = vrot.slane %v430, 1
        %v432 = vadd.f32 %v430, %v431
        %v433 = vsel %vm419, %v336, 0.0
        %v434 = vsel %vm419, %v339, 0.0
        %v435 = vadd.f32 %v433, %v434
        %v436 = vsel %vm419, %v342, 0.0
        %v437 = vadd.f32 %v435, %v436
        %v438 = vsel %vm419, %v345, 0.0
        %v439 = vadd.f32 %v437, %v438
        %v440 = vrot.slane %v439, 4
        %v441 = vadd.f32 %v439, %v440
        %v442 = vrot.slane %v441, 2
        %v443 = vadd.f32 %v441, %v442
        %v444 = vrot.slane %v443, 1
        %v445 = vadd.f32 %v443, %v444
        %v446 = vsel %vm419, %v348, 0.0
        %v447 = vsel %vm419, %v351, 0.0
        %v448 = vadd.f32 %v446, %v447
        %v449 = vsel %vm419, %v354, 0.0
        %v450 = vadd.f32 %v448, %v449
        %v451 = vsel %vm419, %v357, 0.0
        %v452 = vadd.f32 %v450, %v451
        %v453 = vrot.slane %v452, 4
        %v454 = vadd.f32 %v452, %v453
        %v455 = vrot.slane %v454, 2
        %v456 = vadd.f32 %v454, %v455
        %v457 = vrot.slane %v456, 1
        %v458 = vadd.f32 %v456, %v457
        %v459 = vsel %vm419, %v360, 0.0
        %v460 = vsel %vm419, %v363, 0.0
        %v461 = vadd.f32 %v459, %v460
        %v462 = vsel %vm419, %v366, 0.0
        %v463 = vadd.f32 %v461, %v462
        %v464 = vsel %vm419, %v369, 0.0
        %v465 = vadd.f32 %v463, %v464
        %v466 = vrot.slane %v465, 4
        %v467 = vadd.f32 %v465, %v466
        %v468 = vrot.slane %v467, 2
        %v469 = vadd.f32 %v467, %v468
        %v470 = vrot.slane %v469, 1
        %v471 = vadd.f32 %v469, %v470
        %v472 = vsel %vm419, %v372, 0.0
        %v473 = vsel %vm419, %v375, 0.0
        %v474 = vadd.f32 %v472, %v473
        %v475 = vsel %vm419, %v378, 0.0
        %v476 = vadd.f32 %v474, %v475
        %v477 = vsel %vm419, %v381, 0.0
        %v478 = vadd.f32 %v476, %v477
        %v479 = vrot.slane %v478, 4
        %v480 = vadd.f32 %v478, %v479
        %v481 = vrot.slane %v480, 2
        %v482 = vadd.f32 %v480, %v481
        %v483 = vrot.slane %v482, 1
        %v484 = vadd.f32 %v482, %v483
        %v485 = vsel %vm419, %v384, 0.0
        %v486 = vsel %vm419, %v387, 0.0
        %v487 = vadd.f32 %v485, %v486
        %v488 = vsel %vm419, %v390, 0.0
        %v489 = vadd.f32 %v487, %v488
        %v490 = vsel %vm419, %v393, 0.0
        %v491 = vadd.f32 %v489, %v490
        %v492 = vrot.slane %v491, 4
        %v493 = vadd.f32 %v491, %v492
        %v494 = vrot.slane %v493, 2
        %v495 = vadd.f32 %v493, %v494
        %v496 = vrot.slane %v495, 1
        %v497 = vadd.f32 %v495, %v496
        %v498 = vsel %vm419, %v396, 0.0
        %v499 = vsel %vm419, %v399, 0.0
        %v500 = vadd.f32 %v498, %v499
        %v501 = vsel %vm419, %v402, 0.0
        %v502 = vadd.f32 %v500, %v501
        %v503 = vsel %vm419, %v405, 0.0
        %v504 = vadd.f32 %v502, %v503
        %v505 = vrot.slane %v504, 4
        %v506 = vadd.f32 %v504, %v505
        %v507 = vrot.slane %v506, 2
        %v508 = vadd.f32 %v506, %v507
        %v509 = vrot.slane %v508, 1
        %v510 = vadd.f32 %v508, %v509
        %v511 = vsel %vm419, %v408, 0.0
        %v512 = vsel %vm419, %v411, 0.0
        %v513 = vadd.f32 %v511, %v512
        %v514 = vsel %vm419, %v414, 0.0
        %v515 = vadd.f32 %v513, %v514
        %v516 = vsel %vm419, %v417, 0.0
        %v517 = vadd.f32 %v515, %v516
        %v518 = vrot.slane %v517, 4
        %v519 = vadd.f32 %v517, %v518
        %v520 = vrot.slane %v519, 2
        %v521 = vadd.f32 %v519, %v520
        %v522 = vrot.slane %v521, 1
        %v523 = vadd.f32 %v521, %v522
        %v524 = vmul.f32 %v432, 0.0009765625
        %v525 = vmul.f32 %v445, 0.0009765625
        %v526 = vmul.f32 %v458, 0.0009765625
        %v527 = vmul.f32 %v471, 0.0009765625
        %v528 = vmul.f32 %v484, 0.0009765625
        %v529 = vmul.f32 %v497, 0.0009765625
        %v530 = vmul.f32 %v510, 0.0009765625
        %v531 = vmul.f32 %v523, 0.0009765625
        %vm540 = vcmask 1041409
        %v541 = vsel %vm540, %v525, %v524
        %v542 = vsel %vm540, %v527, %v526
        %v543 = vsel %vm540, %v529, %v528
        %v544 = vsel %vm540, %v531, %v530
        %vm549 = vcmask 9216
        %550 = vst.msk [vmem:[%s167] sm:$0x3] %vm549, %v541
        %551 = vst.msk [vmem:[%s167 + $0x2] sm:$0x3] %vm549, %v542
        %552 = vst.msk [vmem:[%s167 + $0x4] sm:$0x3] %vm549, %v543
        %553 = vst.msk [vmem:[%s167 + $0x6] sm:$0x3] %vm549, %v544
        %s554 = smul.u32 4, %s16
        %p555 = scmp.lt.s32.totalorder %s554, 7
        %s556 = scalar_select %p555, %s554, 7
        %s557 = smul.addr %s556, 2
        %s558 = scalar_lea.vmem %s2, %s557
        // Predicated region
        $region33: #{tpu_custom_call.1} parent=27 // pred_check
          %p559 = pneg %p81
        $region34: #{tpu_custom_call.1} parent=27 // pred_check_branch
          %561 = sbr.rel (%p559) target = $region36
        $region35: #{tpu_custom_call.1} parent=27 // pred_region
          %s562 = smul.u32 4, %s16
        $region36: #{tpu_custom_call.1} parent=27 // pred_fallthru
          _
      $region28: #{tpu_custom_call.1} parent=5 // pred_fallthru
        _
      %p563 = scmp.le.s32.totalorder 2, %s11
      // Predicated region
      $region37: #{tpu_custom_call.1} parent=5 // pred_check
        %p564 = pneg %p563
      $region38: #{tpu_custom_call.1} parent=5 // pred_check_branch
        %566 = sbr.rel (%p564) target = $region40
      $region39: #{tpu_custom_call.1} parent=5 // pred_region
        %s567 = ssub.s32 %s11, 2
        // Predicated region
        $region41: #{tpu_custom_call.1} parent=39 // pred_check
          %p568 = pneg %p87
        $region42: #{tpu_custom_call.1} parent=39 // pred_check_branch
          %570 = sbr.rel (%p568) target = $region44
        $region43: #{tpu_custom_call.1} parent=39 // pred_region
          %s571 = smul.u32 4, %s17
          %p572 = scmp.lt.s32.totalorder %s571, 7
          %s573 = scalar_select %p572, %s571, 7
          %s574 = smul.addr %s573, 2
          %s575 = scalar_lea.vmem %s2, %s574
        $region44: #{tpu_custom_call.1} parent=39 // pred_fallthru
          _
      $region40: #{tpu_custom_call.1} parent=5 // pred_fallthru
        _
    $region6: #{tpu_custom_call.1} parent=1 // loop_footer
      %s15 = sadd.s32 1, %s11
    $region7: #{tpu_custom_call.1} parent=1 // loop_footer_branch
      %10 = sbr.rel target = $region3
    $region8: #{tpu_custom_call.1} parent=1 // loop_exit
      _
    %576 = vsyncpa [#allocation3], 1
    %s577 = scalar_lea.sflag [#allocation3], 1
    %578 = vsyncpa %s577, 1

</llo_original>
